<compile_context>
chip_gen: v7x
topology: tpu7x:2x2x1
jax: 0.10.0
libtpu: 0.0.40
codegen_flags: <defaults>
</compile_context>

<pallas_src>
import functools

import jax
import jax.numpy as jnp
from jax import lax
from jax.experimental import pallas as pl
from jax.experimental.pallas import tpu as pltpu

_EPS = 1e-5  # torch.nn.LayerNorm default eps

# Flipped to False (once, process-wide) if this jax build rejects
# pl.Buffered(1) as a BlockSpec pipeline_mode.
_SINGLE_BUFFER_PARAMS = True


# --------------------------------------------------------------------------- #
# Kernels
# --------------------------------------------------------------------------- #
def _layernorm(h, gamma, beta):
    # Single-pass statistics: var = E[h^2] - mean^2 (avoids a separate
    # `centered` temporary / one extra VPU pass); clamp at 0 for safety.
    mean = jnp.mean(h, axis=-1, keepdims=True)
    var = jnp.maximum(jnp.mean(h * h, axis=-1, keepdims=True) - mean * mean, 0.0)
    inv = lax.rsqrt(var + _EPS)
    return (h - mean) * (inv * gamma) + beta


def _resident_kernel(x_ref, w_ref, p_ref, o_ref):
    # x_ref: (T, D) native dtype     w_ref: (D, D) MXU dtype (resident)
    # p_ref: (3, D) f32 = [bias; gamma; beta]
    x = x_ref[...]
    # MXU matmul in the weight's dtype, f32 accumulation.
    y = jnp.dot(x.astype(w_ref.dtype), w_ref[...],
                preferred_element_type=jnp.float32)
    # dropout (eval => identity) + residual + bias, all in f32.
    h = x.astype(jnp.float32) + y + p_ref[0:1, :]
    o_ref[...] = _layernorm(h, p_ref[1:2, :], p_ref[2:3, :]).astype(o_ref.dtype)


def _ktiled_kernel(xf_ref, xk_ref, w_ref, p_ref, o_ref, acc_ref):
    # Grid = (row_blocks, k_blocks), k last / "arbitrary".
    # xf_ref: (T, D) full rows (residual, resident across k)
    # xk_ref: (T, TK) K-chunk of the same rows   w_ref: (TK, D) weight K-slab
    # acc_ref: (T, D) f32 accumulator scratch
    k = pl.program_id(1)

    @pl.when(k == 0)
    def _init():
        # Residual term doubles as the accumulator init.
        acc_ref[...] = xf_ref[...].astype(jnp.float32)

    acc_ref[...] += jnp.dot(xk_ref[...].astype(w_ref.dtype), w_ref[...],
                            preferred_element_type=jnp.float32)

    @pl.when(k == pl.num_programs(1) - 1)
    def _finalize():
        h = acc_ref[...] + p_ref[0:1, :]
        o_ref[...] = _layernorm(h, p_ref[1:2, :], p_ref[2:3, :]).astype(o_ref.dtype)


# --------------------------------------------------------------------------- #
# Helpers
# --------------------------------------------------------------------------- #
def _round_up(x, m):
    return (x + m - 1) // m * m


def _sublane_multiple(dtype):
    # 8 for 4-byte, 16 for 2-byte, 32 for 1-byte element types.
    return max(8, 8 * (4 // jnp.dtype(dtype).itemsize))


def _vmem_ceiling():
    """Usable VMEM budget: physical capacity minus ~16 MiB compiler headroom."""
    cap = 64 << 20  # conservative default (v7x per-TC VMEM)
    try:
        cap = int(getattr(pltpu.get_tpu_info(), "vmem_capacity_bytes", cap))
    except Exception:
        pass
    return max(cap - (16 << 20), 32 << 20)


def _num_tensorcores():
    """Best-effort TC-per-chip count (2 on v7x, 1 on v5e/v6e)."""
    try:
        kind = jax.devices()[0].device_kind.lower()
        if "v7" in kind:
            return 2
    except Exception:
        pass
    return 1


# --------------------------------------------------------------------------- #
# pallas_call wrapper (jitted inner)
# --------------------------------------------------------------------------- #
@functools.partial(
    jax.jit,
    static_argnames=("tile", "k_tile", "use_ktiled", "vmem_limit", "single_buffer"))
def _forward2d(x2d, w_mxu, params, *, tile, k_tile, use_ktiled, vmem_limit,
               single_buffer):
    R, D = x2d.shape
    x_bytes = jnp.dtype(x2d.dtype).itemsize
    w_bytes = jnp.dtype(w_mxu.dtype).itemsize
    grid_rows = pl.cdiv(R, tile)

    if use_ktiled:
        const_idx = lambda i, k: (0, 0)
    else:
        const_idx = lambda i: (0, 0)

    def const_spec(shape):
        # Grid-invariant operand: single-buffer it when supported (the second
        # pipeline buffer is pure VMEM waste -- it is never re-DMA'd anyway).
        if single_buffer:
            return pl.BlockSpec(shape, const_idx, pipeline_mode=pl.Buffered(1))
        return pl.BlockSpec(shape, const_idx)

    flops = 2 * R * D * D + 10 * R * D
    if use_ktiled:
        bytes_accessed = (2 * R * D * x_bytes + R * D * x_bytes
                          + grid_rows * D * D * w_bytes + 3 * D * 4)
    else:
        bytes_accessed = 2 * R * D * x_bytes + D * D * w_bytes + 3 * D * 4
    cost = pl.CostEstimate(flops=flops, transcendentals=R,
                           bytes_accessed=bytes_accessed)

    if use_ktiled:
        grid = (grid_rows, pl.cdiv(D, k_tile))
        return pl.pallas_call(
            _ktiled_kernel,
            out_shape=jax.ShapeDtypeStruct((R, D), x2d.dtype),
            grid_spec=pltpu.PrefetchScalarGridSpec(
                num_scalar_prefetch=0,
                grid=grid,
                in_specs=[
                    pl.BlockSpec((tile, D), lambda i, k: (i, 0)),       # x (residual)
                    pl.BlockSpec((tile, k_tile), lambda i, k: (i, k)),  # x K-chunk
                    pl.BlockSpec((k_tile, D), lambda i, k: (k, 0)),     # weight K-slab
                    const_spec((3, D)),                                 # bias/gamma/beta
                ],
                out_specs=pl.BlockSpec((tile, D), lambda i, k: (i, 0)),
                scratch_shapes=[pltpu.VMEM((tile, D), jnp.float32)],
            ),
            compiler_params=pltpu.CompilerParams(
                dimension_semantics=("parallel", "arbitrary"),
                vmem_limit_bytes=vmem_limit,
            ),
            cost_estimate=cost,
        )(x2d, x2d, w_mxu, params)

    grid = (grid_rows,)
    return pl.pallas_call(
        _resident_kernel,
        out_shape=jax.ShapeDtypeStruct((R, D), x2d.dtype),
        grid_spec=pltpu.PrefetchScalarGridSpec(
            num_scalar_prefetch=0,
            grid=grid,
            in_specs=[
                pl.BlockSpec((tile, D), lambda i: (i, 0)),  # x tile
                const_spec((D, D)),                         # weight (resident)
                const_spec((3, D)),                         # bias/gamma/beta (f32)
            ],
            out_specs=pl.BlockSpec((tile, D), lambda i: (i, 0)),
        ),
        compiler_params=pltpu.CompilerParams(
            dimension_semantics=("parallel",),
            vmem_limit_bytes=vmem_limit,
        ),
        cost_estimate=cost,
    )(x2d, w_mxu, params)


# --------------------------------------------------------------------------- #
# Public entry point
# --------------------------------------------------------------------------- #
def transformer_sublayer(x, w_t, b, gamma, beta, *, tile_rows=None, k_tile=None,
                         use_ktiled=None, cast_matmul_to_bf16=False):
    """Fused Linear(D, D) + dropout(eval) + residual + LayerNorm.

    x: (B, S, D); w_t: (D, D) pre-transposed linear weight (in, out);
    b / gamma / beta: (D,).
    """
    global _SINGLE_BUFFER_PARAMS
    B, S, D = x.shape
    R = B * S
    x2d = x.reshape(R, D)

    # MXU operand dtype: native, or bf16 when requested.  Accumulation and the
    # residual / LayerNorm math stay in f32 either way.
    mxu_dtype = (jnp.bfloat16
                 if (cast_matmul_to_bf16 and jnp.dtype(x.dtype).itemsize >= 4)
                 else x.dtype)
    w_mxu = w_t.astype(mxu_dtype)                              # hoisted, once
    params = jnp.stack([b, gamma, beta]).astype(jnp.float32)   # (3, D) f32 slab

    x_bytes = jnp.dtype(x.dtype).itemsize
    w_bytes = jnp.dtype(mxu_dtype).itemsize
    sublane = _sublane_multiple(x.dtype)
    vmem_ceiling = _vmem_ceiling()

    # --- path selection: resident weight vs. K-tiled accumulator -------------
    if use_ktiled is None:
        use_ktiled = (D * D * w_bytes) > (vmem_ceiling // 3)
    if use_ktiled:
        if k_tile is None or D % k_tile:
            k_tile = next((t for t in (512, 256, 128) if D % t == 0), D)
    else:
        k_tile = None

    # --- VMEM accounting (f32 temporaries counted explicitly) ----------------
    def needed_bytes(tile):
        if use_ktiled:
            return (2 * tile * D * x_bytes          # resident full-x rows
                    + 2 * tile * k_tile * x_bytes   # x K-chunks (double-buffered)
                    + 2 * k_tile * D * w_bytes      # weight K-slabs (double-buffered)
                    + 2 * tile * D * x_bytes        # output tiles
                    + tile * D * 4                  # f32 accumulator scratch
                    + 3 * tile * D * 4              # f32 LayerNorm temporaries
                    + 2 * 8 * D * 4)                # (3, D) params (sublane-padded)
        return (2 * tile * D * x_bytes              # input tiles (double-buffered)
                + 2 * tile * D * x_bytes            # output tiles (double-buffered)
                + D * D * w_bytes                   # resident weight (single-buffered)
                + 4 * tile * D * 4                  # f32 temporaries (y/h/stats/out)
                + 2 * 8 * D * 4)                    # (3, D) params (sublane-padded)

    # --- row-tile selection: biggest candidate that fits the VMEM budget -----
    if tile_rows is not None:
        tile = _round_up(min(tile_rows, _round_up(R, sublane)), sublane)
    else:
        tile = _round_up(R, sublane)          # small-R: one full-size tile, no split
        if tile > 128:
            for cand in (1024, 512, 256, 128):
                cand = _round_up(cand, sublane)
                if cand <= tile and needed_bytes(cand) <= vmem_ceiling:
                    tile = cand
                    break
    while tile > sublane and needed_bytes(tile) > vmem_ceiling:
        tile = _round_up(tile // 2, sublane)

    # --- megacore balance: even number of row blocks on 2-TC chips -----------
    grid_rows = pl.cdiv(R, tile)
    n_cores = _num_tensorcores()
    if n_cores > 1 and grid_rows > 1 and grid_rows % n_cores:
        grid_rows = _round_up(grid_rows, n_cores)
        tile = _round_up(pl.cdiv(R, grid_rows), sublane)

    vmem_limit = int(min(max(needed_bytes(tile) + (4 << 20), 32 << 20), vmem_ceiling))

    attempts = (True, False) if _SINGLE_BUFFER_PARAMS else (False,)
    out2d = None
    for sb in attempts:
        try:
            out2d = _forward2d(x2d, w_mxu, params, tile=tile, k_tile=k_tile,
                               use_ktiled=use_ktiled, vmem_limit=vmem_limit,
                               single_buffer=sb)
            break
        except Exception:
            if sb and len(attempts) > 1:
                # This jax build rejects pl.Buffered(1); fall back (once) to
                # default double-buffering of the grid-invariant operands.
                _SINGLE_BUFFER_PARAMS = False
                continue
            raise
    return out2d.reshape(B, S, D)


# --------------------------------------------------------------------------- #
# Reference + test harness
# --------------------------------------------------------------------------- #
def _reference(x, w_t, b, gamma, beta):
    xf = x.astype(jnp.float32)
    y = jnp.einsum("bsd,de->bse", xf, w_t.astype(jnp.float32),
                   precision=lax.Precision.HIGHEST) + b.astype(jnp.float32)
    h = xf + y
    mean = jnp.mean(h, axis=-1, keepdims=True)
    var = jnp.mean((h - mean) ** 2, axis=-1, keepdims=True)
    return ((h - mean) / jnp.sqrt(var + _EPS) * gamma.astype(jnp.float32)
            + beta.astype(jnp.float32))


def _make_params(key, D, dtype=jnp.float32):
    kw, kb, kg, kbe = jax.random.split(key, 4)
    limit = (6.0 / (D + D)) ** 0.5                      # xavier-uniform
    w = jax.random.uniform(kw, (D, D), minval=-limit, maxval=limit, dtype=dtype)
    w_t = w.T                                           # kernel consumes (in, out)
    b = 0.1 * jax.random.normal(kb, (D,), dtype=dtype)
    gamma = 1.0 + 0.1 * jax.random.normal(kg, (D,), dtype=dtype)
    beta = 0.1 * jax.random.normal(kbe, (D,), dtype=dtype)
    return w_t, b, gamma, beta


if __name__ == "__main__":
    key = jax.random.PRNGKey(0)
    k_small, k_big = jax.random.split(key)

    # 1) small shape implied by the module (B=2, S=8, hidden=32), resident path.
    B, S, D = 2, 8, 32
    kx, kp = jax.random.split(k_small)
    x = jax.random.normal(kx, (B, S, D), dtype=jnp.float32)
    w_t, b, gamma, beta = _make_params(kp, D)
    out = jax.block_until_ready(transformer_sublayer(x, w_t, b, gamma, beta))
    ref = _reference(x, w_t, b, gamma, beta)
    assert out.shape == (B, S, D)
    assert jnp.allclose(out, ref, atol=1e-4, rtol=1e-4), "mismatch (small, resident)"

    # 2) lane-dense shape (D multiple of 128), resident-weight path.
    B2, S2, D2 = 2, 128, 256
    kx2, kp2 = jax.random.split(k_big)
    x2 = jax.random.normal(kx2, (B2, S2, D2), dtype=jnp.float32)
    w_t2, b2, gamma2, beta2 = _make_params(kp2, D2)
    out2 = jax.block_until_ready(transformer_sublayer(x2, w_t2, b2, gamma2, beta2))
    ref2 = _reference(x2, w_t2, b2, gamma2, beta2)
    assert out2.shape == (B2, S2, D2)
    assert jnp.allclose(out2, ref2, atol=2e-3, rtol=2e-3), "mismatch (lane-dense, resident)"

    # 3) same shape, forced K-tiled accumulator path (the large-D code path).
    out3 = jax.block_until_ready(
        transformer_sublayer(x2, w_t2, b2, gamma2, beta2, use_ktiled=True, k_tile=128))
    assert jnp.allclose(out3, ref2, atol=2e-3, rtol=2e-3), "mismatch (K-tiled)"

    # 4) bf16 MXU operands (v5e-oriented fast path); residual/LN remain f32.
    out4 = jax.block_until_ready(
        transformer_sublayer(x2, w_t2, b2, gamma2, beta2, cast_matmul_to_bf16=True))
    assert jnp.allclose(out4, ref2, atol=5e-2, rtol=5e-2), "mismatch (bf16 MXU operands)"

    print("KERNEL_OK")
</pallas_src>

<mosaic_0001>
module attributes {stable_mosaic.version = 11 : i64} {
  func.func @_resident_kernel(%arg0: i32, %arg1: memref<16x32xf32, #tpu.memory_space<vmem>>, %arg2: memref<32x32xf32, #tpu.memory_space<vmem>>, %arg3: memref<3x32xf32, #tpu.memory_space<vmem>>, %arg4: memref<16x32xf32, #tpu.memory_space<vmem>>) attributes {dimension_semantics = [#tpu.dimension_semantics<parallel>], iteration_bounds = array<i64: 1>, scalar_prefetch = 0 : i64, scratch_operands = 0 : i64, tpu.core_type = #tpu.core_type<tc>, window_params = [{transform_indices = @transform_0, window_bounds = array<i64: 16, 32>}, {pipeline_mode = #tpu.pipeline_mode<synchronous>, transform_indices = @transform_1, window_bounds = array<i64: 32, 32>}, {pipeline_mode = #tpu.pipeline_mode<synchronous>, transform_indices = @transform_2, window_bounds = array<i64: 3, 32>}, {transform_indices = @transform_3, window_bounds = array<i64: 16, 32>}]} {
    %c0 = arith.constant 0 : index
    %c0_0 = arith.constant 0 : index
    %0 = vector.load %arg1[%c0, %c0_0] : memref<16x32xf32, #tpu.memory_space<vmem>>, vector<16x32xf32>
    %c0_1 = arith.constant 0 : index
    %c0_2 = arith.constant 0 : index
    %1 = vector.load %arg2[%c0_1, %c0_2] : memref<32x32xf32, #tpu.memory_space<vmem>>, vector<32x32xf32>
    %cst = arith.constant dense<0.000000e+00> : vector<16x32xf32>
    %2 = tpu.matmul %0, %1, %cst {dimension_numbers = #tpu.dot_dimension_numbers<[1], [0], [0], [1], [0, 0, 1, 1], [], []>} : vector<16x32xf32>, vector<32x32xf32>, vector<16x32xf32> -> vector<16x32xf32>
    %3 = arith.addf %0, %2 : vector<16x32xf32>
    %c0_3 = arith.constant 0 : index
    %c0_4 = arith.constant 0 : index
    %4 = vector.load %arg3[%c0_3, %c0_4] : memref<3x32xf32, #tpu.memory_space<vmem>>, vector<1x32xf32>
    %5 = vector.broadcast %4 : vector<1x32xf32> to vector<16x32xf32>
    %6 = arith.addf %3, %5 : vector<16x32xf32>
    %c1 = arith.constant 1 : index
    %c0_5 = arith.constant 0 : index
    %7 = vector.load %arg3[%c1, %c0_5] : memref<3x32xf32, #tpu.memory_space<vmem>>, vector<1x32xf32>
    %c2 = arith.constant 2 : index
    %c0_6 = arith.constant 0 : index
    %8 = vector.load %arg3[%c2, %c0_6] : memref<3x32xf32, #tpu.memory_space<vmem>>, vector<1x32xf32>
    %cst_7 = arith.constant dense<0.000000e+00> : vector<16xf32>
    %9 = vector.multi_reduction <add>, %6, %cst_7 [1] : vector<16x32xf32> to vector<16xf32>
    %10 = vector.shape_cast %9 : vector<16xf32> to vector<16x1xf32>
    %cst_8 = arith.constant 3.200000e+01 : f32
    %11 = vector.broadcast %cst_8 : f32 to vector<16x1xf32>
    %12 = arith.divf %10, %11 : vector<16x1xf32>
    %13 = arith.mulf %6, %6 : vector<16x32xf32>
    %cst_9 = arith.constant dense<0.000000e+00> : vector<16xf32>
    %14 = vector.multi_reduction <add>, %13, %cst_9 [1] : vector<16x32xf32> to vector<16xf32>
    %15 = vector.shape_cast %14 : vector<16xf32> to vector<16x1xf32>
    %cst_10 = arith.constant 3.200000e+01 : f32
    %16 = vector.broadcast %cst_10 : f32 to vector<16x1xf32>
    %17 = arith.divf %15, %16 : vector<16x1xf32>
    %18 = arith.mulf %12, %12 : vector<16x1xf32>
    %19 = arith.subf %17, %18 : vector<16x1xf32>
    %cst_11 = arith.constant 0.000000e+00 : f32
    %20 = vector.broadcast %cst_11 : f32 to vector<16x1xf32>
    %21 = arith.maximumf %19, %20 : vector<16x1xf32>
    %cst_12 = arith.constant 9.99999974E-6 : f32
    %22 = vector.broadcast %cst_12 : f32 to vector<16x1xf32>
    %23 = arith.addf %21, %22 : vector<16x1xf32>
    %24 = math.rsqrt %23 : vector<16x1xf32>
    %25 = vector.broadcast %12 : vector<16x1xf32> to vector<16x32xf32>
    %26 = arith.subf %6, %25 : vector<16x32xf32>
    %27 = vector.broadcast %24 : vector<16x1xf32> to vector<16x32xf32>
    %28 = vector.broadcast %7 : vector<1x32xf32> to vector<16x32xf32>
    %29 = arith.mulf %27, %28 : vector<16x32xf32>
    %30 = arith.mulf %26, %29 : vector<16x32xf32>
    %31 = vector.broadcast %8 : vector<1x32xf32> to vector<16x32xf32>
    %32 = arith.addf %30, %31 : vector<16x32xf32>
    %c0_13 = arith.constant 0 : index
    %c0_14 = arith.constant 0 : index
    %33 = vector.load %arg4[%c0_13, %c0_14] : memref<16x32xf32, #tpu.memory_space<vmem>>, vector<16x32xf32>
    tpu.vector_store %arg4[%c0_13, %c0_14], %32 {strides = array<i32>} : memref<16x32xf32, #tpu.memory_space<vmem>>, vector<16x32xf32>,
    return
  }
  func.func @transform_0(%arg0: i32) -> (i32, i32) {
    %c0_i32 = arith.constant 0 : i32
    %c0_i32_0 = arith.constant 0 : i32
    return %arg0, %c0_i32 : i32, i32
  }
  func.func @transform_1(%arg0: i32) -> (i32, i32) {
    %c0_i32 = arith.constant 0 : i32
    %c0_i32_0 = arith.constant 0 : i32
    %c0_i32_1 = arith.constant 0 : i32
    return %c0_i32, %c0_i32_0 : i32, i32
  }
  func.func @transform_2(%arg0: i32) -> (i32, i32) {
    %c0_i32 = arith.constant 0 : i32
    %c0_i32_0 = arith.constant 0 : i32
    %c0_i32_1 = arith.constant 0 : i32
    return %c0_i32, %c0_i32_0 : i32, i32
  }
  func.func @transform_3(%arg0: i32) -> (i32, i32) {
    %c0_i32 = arith.constant 0 : i32
    %c0_i32_0 = arith.constant 0 : i32
    return %arg0, %c0_i32 : i32, i32
  }
}

module attributes {stable_mosaic.version = 11 : i64} {
  func.func @_resident_kernel(%arg0: i32, %arg1: memref<16x32xf32, #tpu.memory_space<vmem>>, %arg2: memref<32x32xf32, #tpu.memory_space<vmem>>, %arg3: memref<3x32xf32, #tpu.memory_space<vmem>>, %arg4: memref<16x32xf32, #tpu.memory_space<vmem>>) attributes {dimension_semantics = [#tpu.dimension_semantics<parallel>], iteration_bounds = array<i64: 1>, scalar_prefetch = 0 : i64, scratch_operands = 0 : i64, tpu.core_type = #tpu.core_type<tc>, window_params = [{transform_indices = @transform_0, window_bounds = array<i64: 16, 32>}, {pipeline_mode = #tpu.pipeline_mode<synchronous>, transform_indices = @transform_1, window_bounds = array<i64: 32, 32>}, {pipeline_mode = #tpu.pipeline_mode<synchronous>, transform_indices = @transform_2, window_bounds = array<i64: 3, 32>}, {transform_indices = @transform_3, window_bounds = array<i64: 16, 32>}]} {
    %c0 = arith.constant 0 : index
    %c0_0 = arith.constant 0 : index
    %0 = vector.load %arg1[%c0, %c0_0] : memref<16x32xf32, #tpu.memory_space<vmem>>, vector<16x32xf32>
    %c0_1 = arith.constant 0 : index
    %c0_2 = arith.constant 0 : index
    %1 = vector.load %arg2[%c0_1, %c0_2] : memref<32x32xf32, #tpu.memory_space<vmem>>, vector<32x32xf32>
    %cst = arith.constant dense<0.000000e+00> : vector<16x32xf32>
    %2 = tpu.matmul %0, %1, %cst {dimension_numbers = #tpu.dot_dimension_numbers<[1], [0], [0], [1], [0, 0, 1, 1], [], []>} : vector<16x32xf32>, vector<32x32xf32>, vector<16x32xf32> -> vector<16x32xf32>
    %3 = arith.addf %0, %2 : vector<16x32xf32>
    %c0_3 = arith.constant 0 : index
    %c0_4 = arith.constant 0 : index
    %4 = vector.load %arg3[%c0_3, %c0_4] : memref<3x32xf32, #tpu.memory_space<vmem>>, vector<1x32xf32>
    %5 = vector.broadcast %4 : vector<1x32xf32> to vector<16x32xf32>
    %6 = arith.addf %3, %5 : vector<16x32xf32>
    %c1 = arith.constant 1 : index
    %c0_5 = arith.constant 0 : index
    %7 = vector.load %arg3[%c1, %c0_5] : memref<3x32xf32, #tpu.memory_space<vmem>>, vector<1x32xf32>
    %c2 = arith.constant 2 : index
    %c0_6 = arith.constant 0 : index
    %8 = vector.load %arg3[%c2, %c0_6] : memref<3x32xf32, #tpu.memory_space<vmem>>, vector<1x32xf32>
    %cst_7 = arith.constant dense<0.000000e+00> : vector<16xf32>
    %9 = vector.multi_reduction <add>, %6, %cst_7 [1] : vector<16x32xf32> to vector<16xf32>
    %10 = vector.shape_cast %9 : vector<16xf32> to vector<16x1xf32>
    %cst_8 = arith.constant 3.200000e+01 : f32
    %11 = vector.broadcast %cst_8 : f32 to vector<16x1xf32>
    %12 = arith.divf %10, %11 : vector<16x1xf32>
    %13 = arith.mulf %6, %6 : vector<16x32xf32>
    %cst_9 = arith.constant dense<0.000000e+00> : vector<16xf32>
    %14 = vector.multi_reduction <add>, %13, %cst_9 [1] : vector<16x32xf32> to vector<16xf32>
    %15 = vector.shape_cast %14 : vector<16xf32> to vector<16x1xf32>
    %cst_10 = arith.constant 3.200000e+01 : f32
    %16 = vector.broadcast %cst_10 : f32 to vector<16x1xf32>
    %17 = arith.divf %15, %16 : vector<16x1xf32>
    %18 = arith.mulf %12, %12 : vector<16x1xf32>
    %19 = arith.subf %17, %18 : vector<16x1xf32>
    %cst_11 = arith.constant 0.000000e+00 : f32
    %20 = vector.broadcast %cst_11 : f32 to vector<16x1xf32>
    %21 = arith.maximumf %19, %20 : vector<16x1xf32>
    %cst_12 = arith.constant 9.99999974E-6 : f32
    %22 = vector.broadcast %cst_12 : f32 to vector<16x1xf32>
    %23 = arith.addf %21, %22 : vector<16x1xf32>
    %24 = math.rsqrt %23 : vector<16x1xf32>
    %25 = vector.broadcast %12 : vector<16x1xf32> to vector<16x32xf32>
    %26 = arith.subf %6, %25 : vector<16x32xf32>
    %27 = vector.broadcast %24 : vector<16x1xf32> to vector<16x32xf32>
    %28 = vector.broadcast %7 : vector<1x32xf32> to vector<16x32xf32>
    %29 = arith.mulf %27, %28 : vector<16x32xf32>
    %30 = arith.mulf %26, %29 : vector<16x32xf32>
    %31 = vector.broadcast %8 : vector<1x32xf32> to vector<16x32xf32>
    %32 = arith.addf %30, %31 : vector<16x32xf32>
    %c0_13 = arith.constant 0 : index
    %c0_14 = arith.constant 0 : index
    %33 = vector.load %arg4[%c0_13, %c0_14] : memref<16x32xf32, #tpu.memory_space<vmem>>, vector<16x32xf32>
    tpu.vector_store %arg4[%c0_13, %c0_14], %32 {strides = array<i32>} : memref<16x32xf32, #tpu.memory_space<vmem>>, vector<16x32xf32>,
    return
  }
  func.func @transform_0(%arg0: i32) -> (i32, i32) {
    %c0_i32 = arith.constant 0 : i32
    %c0_i32_0 = arith.constant 0 : i32
    return %arg0, %c0_i32 : i32, i32
  }
  func.func @transform_1(%arg0: i32) -> (i32, i32) {
    %c0_i32 = arith.constant 0 : i32
    %c0_i32_0 = arith.constant 0 : i32
    %c0_i32_1 = arith.constant 0 : i32
    return %c0_i32, %c0_i32_0 : i32, i32
  }
  func.func @transform_2(%arg0: i32) -> (i32, i32) {
    %c0_i32 = arith.constant 0 : i32
    %c0_i32_0 = arith.constant 0 : i32
    %c0_i32_1 = arith.constant 0 : i32
    return %c0_i32, %c0_i32_0 : i32, i32
  }
  func.func @transform_3(%arg0: i32) -> (i32, i32) {
    %c0_i32 = arith.constant 0 : i32
    %c0_i32_0 = arith.constant 0 : i32
    return %arg0, %c0_i32 : i32, i32
  }
}

</mosaic_0001>

<llo_original>
// kernel: _forward2d.1
$region0: #{_forward2d.1}
  #allocation0 [shape = 'u32[]', space=smem, size = 0x4, offset = 0x4, fixed_abs, tag = 'smem constant byte address 0x4 - core index']
  #allocation1 [shape = 'u32[144,128]{1,0:T(1,128)}', space=vmem, size = 0x12000, scoped, tag = 'internal scratch']
  %s0 = inlined_call_operand.hbm [shape: f32[16,32], index: 0, kind: input, shape index: {}]
  %s1 = inlined_call_operand.hbm [shape: f32[32,32], index: 1, kind: input, shape index: {}]
  %s2 = inlined_call_operand.vmem [shape: f32[3,32], index: 2, kind: input, shape index: {}]
  %s3 = inlined_call_operand.hbm [shape: f32[16,32], index: 3, kind: output, shape index: {}]
  %s4 = sld [smem:[#allocation0]]
  $region30: #{_forward2d.1} parent=0
    _
  %s6 = ssub.s32 1, %s4
  %s7 = scalar_select 0, %s6, %s4
  $region1: #{_forward2d.1} parent=0
    #allocation2 [shape = 'u8[8192]{0}', space=vmem, size = 0x2000, scoped, tag = 'input window, operand 0, single buffered']
    #allocation3 [shape = 's32[1]{0}', space=sflag, size = 0x4, scoped, tag = 'scoped memory for _forward2d.1']
    #allocation4 [shape = 's32[1]{0}', space=sflag, size = 0x4, scoped, tag = 'scoped memory for _forward2d.1']
    #allocation5 [shape = 'u8[16384]{0}', space=vmem, size = 0x4000, scoped, tag = 'input window, operand 1, single buffered']
    #allocation6 [shape = 's32[1]{0}', space=sflag, size = 0x4, scoped, tag = 'scoped memory for _forward2d.1']
    #allocation7 [shape = 'u8[8192]{0}', space=vmem, size = 0x2000, scoped, tag = 'output window, operand 0, single buffered']
    %8 = vsyncpa [#allocation3], 0
    %9 = vsyncpa [#allocation6], 0
    %10 = vsyncpa [#allocation4], 0
    // Predicated region
    $region2: #{_forward2d.1} parent=1 // pred_check
      _
    $region3: #{_forward2d.1} parent=1 // pred_check_branch
      %12 = sbr.rel (0) target = $region5
    $region4: #{_forward2d.1} parent=1 // pred_region
      %s14 = ssub.s32 256, 256
      %15 = vsyncadd [#allocation3], %s14
      %s16 = sshll.u32 [#allocation2], 4
      %s17 = int_to_ptr.vmem [resolvable:$true] %s16
      %22 = dma.hbm_to_vmem [thread:$0]  %s0, 256, %s17, [#allocation3], 128, 128, 8
    $region5: #{_forward2d.1} parent=1 // pred_fallthru
      _
    // Predicated region
    $region6: #{_forward2d.1} parent=1 // pred_check
      _
    $region7: #{_forward2d.1} parent=1 // pred_check_branch
      %24 = sbr.rel (0) target = $region9
    $region8: #{_forward2d.1} parent=1 // pred_region
      %s26 = ssub.s32 512, 512
      %27 = vsyncadd [#allocation6], %s26
      %s28 = sshll.u32 [#allocation5], 4
      %s29 = int_to_ptr.vmem [resolvable:$true] %s28
      %34 = dma.hbm_to_vmem [thread:$0]  %s1, 512, %s29, [#allocation6], 128, 128, 8
    $region9: #{_forward2d.1} parent=1 // pred_fallthru
      _
    // Predicated region
    $region10: #{_forward2d.1} parent=1 // pred_check
      _
    $region11: #{_forward2d.1} parent=1 // pred_check_branch
      %36 = sbr.rel (0) target = $region13
    $region12: #{_forward2d.1} parent=1 // pred_region
      _
    $region13: #{_forward2d.1} parent=1 // pred_fallthru
      _
    // Predicated region
    $region14: #{_forward2d.1} parent=1 // pred_check
      _
    $region15: #{_forward2d.1} parent=1 // pred_check_branch
      %38 = sbr.rel (0) target = $region17
    $region16: #{_forward2d.1} parent=1 // pred_region
      %39 = dma.done [#allocation3], 256
    $region17: #{_forward2d.1} parent=1 // pred_fallthru
      _
    // Predicated region
    $region18: #{_forward2d.1} parent=1 // pred_check
      _
    $region19: #{_forward2d.1} parent=1 // pred_check_branch
      %41 = sbr.rel (0) target = $region21
    $region20: #{_forward2d.1} parent=1 // pred_region
      %42 = dma.done [#allocation6], 512
    $region21: #{_forward2d.1} parent=1 // pred_fallthru
      _
    %v43 = vld [vmem:[#allocation2] sm:$0xff]
    %v44 = vld [vmem:[#allocation2 + $0x8] sm:$0xff]
    %v45 = vld [vmem:[#allocation5] sm:$0xff]
    %v46 = vld [vmem:[#allocation5 + $0x8] sm:$0xff]
    %v47 = vld [vmem:[#allocation5 + $0x10] sm:$0xff]
    %v48 = vld [vmem:[#allocation5 + $0x18] sm:$0xff]
    %vm49 = vcmask 261120
    %v51 = vsel %vm49, %v43, 0
    %v54 = vsel %vm49, %v44, 0
    %56 = vmatprep.subr.mxu0 0.0
    %57 = vmatpush1.msra.mxu0 %v45
    %58 = vmatprep.subr.mxu0 0.0
    %59 = vmatpush1.msra.mxu0 %v46
    %60 = vmatprep.subr.mxu0 0.0
    %61 = vmatpush1.msra.mxu0 %v47
    %62 = vmatprep.subr.mxu0 0.0
    %63 = vmatpush1.msra.mxu0 %v48
    %64 = vmatprep.subr.mxu0 0.0
    %65 = vmatpush1.msra.mxu0 0.0
    %66 = vmatprep.subr.mxu0 0.0
    %67 = vmatpush1.msra.mxu0 0.0
    %68 = vmatprep.subr.mxu0 0.0
    %69 = vmatpush1.msra.mxu0 0.0
    %70 = vmatprep.subr.mxu0 0.0
    %71 = vmatpush1.msra.mxu0 0.0
    %72 = vmatprep.subr.mxu0 0.0
    %73 = vmatpush1.msra.mxu0 0.0
    %74 = vmatprep.subr.mxu0 0.0
    %75 = vmatpush1.msra.mxu0 0.0
    %76 = vmatprep.subr.mxu0 0.0
    %77 = vmatpush1.msra.mxu0 0.0
    %78 = vmatprep.subr.mxu0 0.0
    %79 = vmatpush1.msra.mxu0 0.0
    %80 = vmatprep.subr.mxu0 0.0
    %81 = vmatpush1.msra.mxu0 0.0
    %82 = vmatprep.subr.mxu0 0.0
    %83 = vmatpush1.msra.mxu0 0.0
    %84 = vmatprep.subr.mxu0 0.0
    %85 = vmatpush1.msra.mxu0 0.0
    %86 = vmatprep.subr.mxu0 0.0
    %87 = vmatpush1.msra.mxu0 0.0
    %88 = vmatprep.subr.mxu0 0.0
    %89 = vmatpush1.msra.mxu0 0.0
    %90 = vmatprep.subr.mxu0 0.0
    %91 = vmatpush1.msra.mxu0 0.0
    %92 = vmatprep.subr.mxu0 0.0
    %93 = vmatpush1.msra.mxu0 0.0
    %94 = vmatprep.subr.mxu0 0.0
    %95 = vmatpush1.msra.mxu0 0.0
    %96 = vmatprep.subr.mxu0 0.0
    %97 = vmatpush1.msra.mxu0 0.0
    %98 = vmatprep.subr.mxu0 0.0
    %99 = vmatpush1.msra.mxu0 0.0
    %100 = vmatprep.subr.mxu0 0.0
    %101 = vmatpush1.msra.mxu0 0.0
    %102 = vmatprep.subr.mxu0 0.0
    %103 = vmatpush1.msra.mxu0 0.0
    %104 = vmatprep.subr.mxu0 0.0
    %105 = vmatpush1.msra.mxu0 0.0
    %106 = vmatprep.subr.mxu0 0.0
    %107 = vmatpush1.msra.mxu0 0.0
    %108 = vmatprep.subr.mxu0 0.0
    %109 = vmatpush1.msra.mxu0 0.0
    %110 = vmatprep.subr.mxu0 0.0
    %111 = vmatpush1.msra.mxu0 0.0
    %112 = vmatprep.subr.mxu0 0.0
    %113 = vmatpush1.msra.mxu0 0.0
    %114 = vmatprep.subr.mxu0 0.0
    %115 = vmatpush1.msra.mxu0 0.0
    %116 = vmatprep.subr.mxu0 0.0
    %117 = vmatpush1.msra.mxu0 0.0
    %118 = vmatprep.subr.mxu0 0.0
    %119 = vmatpush1.msra.mxu0 0.0
    %120 = vmatprep.mubr.f32.mxu0 0.0
    %121 = vmatmul.mubr.f32.gmra.mrb[0].mxu0 %v51
    %v122 = vpop.f32.mrb[0].mxu0
    %v123 = vadd.f32 0.0, %v122
    %v124 = vpop.f32.mrb[0].mxu0
    %125 = vmatprep.mubr.f32.mxu0 0.0
    %126 = vmatmul.mubr.f32.gmra.mrb[0].mxu0 %v54
    %v127 = vpop.f32.mrb[0].mxu0
    %v128 = vadd.f32 0.0, %v127
    %v129 = vpop.f32.mrb[0].mxu0
    %130 = vdwg.mxu0
    %v131 = vadd.f32 %v43, %v123
    %v132 = vadd.f32 %v44, %v128
    %v133 = vld [vmem:[%s2] sm:$0x1]
    %v134 = vlaneseq
    %v135 = vshrl.u32 %v134, 7
    %v136 = vsub.s32 0, %v135
    %v137 = vrot.slane %v133, %v136
    %v138 = vadd.f32 %v131, %v137
    %v139 = vadd.f32 %v132, %v137
    %v140 = vld [vmem:[%s2 + $0x1] sm:$0x1]
    %v141 = vld [vmem:[%s2 + $0x2] sm:$0x1]
    %v142 = vsel %vm49, %v138, 0.0
    %143 = vadd.xlane.f32.xlu0 %v142
    %v144 = vpop.xlane.xlu0 %143
    %v145 = vsel %vm49, %v139, 0.0
    %146 = vadd.xlane.f32.xlu0 %v145
    %v147 = vpop.xlane.xlu0 %146
    %v148 = vrcp.pop 32.0
    %v149 = vmul.f32 %v144, %v148
    %v150 = vmul.f32 %v147, %v148
    %v151 = vmul.f32 %v138, %v138
    %v152 = vmul.f32 %v139, %v139
    %v153 = vsel %vm49, %v151, 0.0
    %154 = vadd.xlane.f32.xlu0 %v153
    %v155 = vpop.xlane.xlu0 %154
    %v156 = vsel %vm49, %v152, 0.0
    %157 = vadd.xlane.f32.xlu0 %v156
    %v158 = vpop.xlane.xlu0 %157
    %v159 = vmul.f32 %v155, %v148
    %v160 = vmul.f32 %v158, %v148
    %v161 = vmul.f32 %v149, %v149
    %v162 = vmul.f32 %v150, %v150
    %v163 = vsub.f32 %v159, %v161
    %v164 = vsub.f32 %v160, %v162
    %v165 = vmax.f32 %v163, 0.0
    %v166 = vmax.f32 %v164, 0.0
    %v167 = vadd.f32 %v165, 1e-05
    %v168 = vadd.f32 %v166, 1e-05
    %v169 = vrsqrt.pop %v167
    %v170 = vrsqrt.pop %v168
    %v171 = vsub.f32 %v138, %v149
    %v172 = vsub.f32 %v139, %v150
    %v173 = vlaneseq
    %v174 = vshrl.u32 %v173, 7
    %v175 = vsub.s32 0, %v174
    %v176 = vrot.slane %v140, %v175
    %v177 = vmul.f32 %v169, %v176
    %v178 = vmul.f32 %v170, %v176
    %v179 = vmul.f32 %v171, %v177
    %v180 = vmul.f32 %v172, %v178
    %v181 = vlaneseq
    %v182 = vshrl.u32 %v181, 7
    %v183 = vsub.s32 0, %v182
    %v184 = vrot.slane %v141, %v183
    %v185 = vadd.f32 %v179, %v184
    %v186 = vadd.f32 %v180, %v184
    %187 = vst.msk [vmem:[#allocation7] sm:$0xff] %vm49, %v185
    %188 = vst.msk [vmem:[#allocation7 + $0x8] sm:$0xff] %vm49, %v186
    // Predicated region
    $region22: #{_forward2d.1} parent=1 // pred_check
      _
    $region23: #{_forward2d.1} parent=1 // pred_check_branch
      %190 = sbr.rel (0) target = $region25
    $region24: #{_forward2d.1} parent=1 // pred_region
      %s192 = ssub.s32 256, 256
      %193 = vsyncadd [#allocation4], %s192
      %s194 = sshll.u32 [#allocation7], 4
      %s195 = int_to_ptr.vmem [resolvable:$true] %s194
      %200 = dma.vmem_to_hbm [thread:$0]  %s195, 256, %s3, [#allocation4], 128, 128, 8
    $region25: #{_forward2d.1} parent=1 // pred_fallthru
      _
    // Predicated region
    $region26: #{_forward2d.1} parent=1 // pred_check
      _
    $region27: #{_forward2d.1} parent=1 // pred_check_branch
      %202 = sbr.rel (0) target = $region29
    $region28: #{_forward2d.1} parent=1 // pred_region
      %203 = dma.done [#allocation4], 256
    $region29: #{_forward2d.1} parent=1 // pred_fallthru
      _
    %204 = vsyncpa [#allocation3], 1
    %205 = vsyncpa [#allocation6], 1
    %206 = vsyncpa [#allocation4], 1

// kernel: _forward2d.1
$region0: #{_forward2d.1}
  #allocation0 [shape = 'u32[]', space=smem, size = 0x4, offset = 0x4, fixed_abs, tag = 'smem constant byte address 0x4 - core index']
  #allocation1 [shape = 'u32[144,128]{1,0:T(1,128)}', space=vmem, size = 0x12000, scoped, tag = 'internal scratch']
  %s0 = inlined_call_operand.hbm [shape: f32[16,32], index: 0, kind: input, shape index: {}]
  %s1 = inlined_call_operand.hbm [shape: f32[32,32], index: 1, kind: input, shape index: {}]
  %s2 = inlined_call_operand.vmem [shape: f32[3,32], index: 2, kind: input, shape index: {}]
  %s3 = inlined_call_operand.hbm [shape: f32[16,32], index: 3, kind: output, shape index: {}]
  %s4 = sld [smem:[#allocation0]]
  $region30: #{_forward2d.1} parent=0
    _
  %s6 = ssub.s32 1, %s4
  %s7 = scalar_select 0, %s6, %s4
  $region1: #{_forward2d.1} parent=0
    #allocation2 [shape = 'u8[8192]{0}', space=vmem, size = 0x2000, scoped, tag = 'input window, operand 0, single buffered']
    #allocation3 [shape = 's32[1]{0}', space=sflag, size = 0x4, scoped, tag = 'scoped memory for _forward2d.1']
    #allocation4 [shape = 's32[1]{0}', space=sflag, size = 0x4, scoped, tag = 'scoped memory for _forward2d.1']
    #allocation5 [shape = 'u8[16384]{0}', space=vmem, size = 0x4000, scoped, tag = 'input window, operand 1, single buffered']
    #allocation6 [shape = 's32[1]{0}', space=sflag, size = 0x4, scoped, tag = 'scoped memory for _forward2d.1']
    #allocation7 [shape = 'u8[8192]{0}', space=vmem, size = 0x2000, scoped, tag = 'output window, operand 0, single buffered']
    %8 = vsyncpa [#allocation3], 0
    %9 = vsyncpa [#allocation6], 0
    %10 = vsyncpa [#allocation4], 0
    // Predicated region
    $region2: #{_forward2d.1} parent=1 // pred_check
      _
    $region3: #{_forward2d.1} parent=1 // pred_check_branch
      %12 = sbr.rel (0) target = $region5
    $region4: #{_forward2d.1} parent=1 // pred_region
      %s14 = ssub.s32 256, 256
      %15 = vsyncadd [#allocation3], %s14
      %s16 = sshll.u32 [#allocation2], 4
      %s17 = int_to_ptr.vmem [resolvable:$true] %s16
      %22 = dma.hbm_to_vmem [thread:$0]  %s0, 256, %s17, [#allocation3], 128, 128, 8
    $region5: #{_forward2d.1} parent=1 // pred_fallthru
      _
    // Predicated region
    $region6: #{_forward2d.1} parent=1 // pred_check
      _
    $region7: #{_forward2d.1} parent=1 // pred_check_branch
      %24 = sbr.rel (0) target = $region9
    $region8: #{_forward2d.1} parent=1 // pred_region
      %s26 = ssub.s32 512, 512
      %27 = vsyncadd [#allocation6], %s26
      %s28 = sshll.u32 [#allocation5], 4
      %s29 = int_to_ptr.vmem [resolvable:$true] %s28
      %34 = dma.hbm_to_vmem [thread:$0]  %s1, 512, %s29, [#allocation6], 128, 128, 8
    $region9: #{_forward2d.1} parent=1 // pred_fallthru
      _
    // Predicated region
    $region10: #{_forward2d.1} parent=1 // pred_check
      _
    $region11: #{_forward2d.1} parent=1 // pred_check_branch
      %36 = sbr.rel (0) target = $region13
    $region12: #{_forward2d.1} parent=1 // pred_region
      _
    $region13: #{_forward2d.1} parent=1 // pred_fallthru
      _
    // Predicated region
    $region14: #{_forward2d.1} parent=1 // pred_check
      _
    $region15: #{_forward2d.1} parent=1 // pred_check_branch
      %38 = sbr.rel (0) target = $region17
    $region16: #{_forward2d.1} parent=1 // pred_region
      %39 = dma.done [#allocation3], 256
    $region17: #{_forward2d.1} parent=1 // pred_fallthru
      _
    // Predicated region
    $region18: #{_forward2d.1} parent=1 // pred_check
      _
    $region19: #{_forward2d.1} parent=1 // pred_check_branch
      %41 = sbr.rel (0) target = $region21
    $region20: #{_forward2d.1} parent=1 // pred_region
      %42 = dma.done [#allocation6], 512
    $region21: #{_forward2d.1} parent=1 // pred_fallthru
      _
    %v43 = vld [vmem:[#allocation2] sm:$0xff]
    %v44 = vld [vmem:[#allocation2 + $0x8] sm:$0xff]
    %v45 = vld [vmem:[#allocation5] sm:$0xff]
    %v46 = vld [vmem:[#allocation5 + $0x8] sm:$0xff]
    %v47 = vld [vmem:[#allocation5 + $0x10] sm:$0xff]
    %v48 = vld [vmem:[#allocation5 + $0x18] sm:$0xff]
    %vm49 = vcmask 261120
    %v51 = vsel %vm49, %v43, 0
    %v54 = vsel %vm49, %v44, 0
    %56 = vmatprep.subr.mxu0 0.0
    %57 = vmatpush1.msra.mxu0 %v45
    %58 = vmatprep.subr.mxu0 0.0
    %59 = vmatpush1.msra.mxu0 %v46
    %60 = vmatprep.subr.mxu0 0.0
    %61 = vmatpush1.msra.mxu0 %v47
    %62 = vmatprep.subr.mxu0 0.0
    %63 = vmatpush1.msra.mxu0 %v48
    %64 = vmatprep.subr.mxu0 0.0
    %65 = vmatpush1.msra.mxu0 0.0
    %66 = vmatprep.subr.mxu0 0.0
    %67 = vmatpush1.msra.mxu0 0.0
    %68 = vmatprep.subr.mxu0 0.0
    %69 = vmatpush1.msra.mxu0 0.0
    %70 = vmatprep.subr.mxu0 0.0
    %71 = vmatpush1.msra.mxu0 0.0
    %72 = vmatprep.subr.mxu0 0.0
    %73 = vmatpush1.msra.mxu0 0.0
    %74 = vmatprep.subr.mxu0 0.0
    %75 = vmatpush1.msra.mxu0 0.0
    %76 = vmatprep.subr.mxu0 0.0
    %77 = vmatpush1.msra.mxu0 0.0
    %78 = vmatprep.subr.mxu0 0.0
    %79 = vmatpush1.msra.mxu0 0.0
    %80 = vmatprep.subr.mxu0 0.0
    %81 = vmatpush1.msra.mxu0 0.0
    %82 = vmatprep.subr.mxu0 0.0
    %83 = vmatpush1.msra.mxu0 0.0
    %84 = vmatprep.subr.mxu0 0.0
    %85 = vmatpush1.msra.mxu0 0.0
    %86 = vmatprep.subr.mxu0 0.0
    %87 = vmatpush1.msra.mxu0 0.0
    %88 = vmatprep.subr.mxu0 0.0
    %89 = vmatpush1.msra.mxu0 0.0
    %90 = vmatprep.subr.mxu0 0.0
    %91 = vmatpush1.msra.mxu0 0.0
    %92 = vmatprep.subr.mxu0 0.0
    %93 = vmatpush1.msra.mxu0 0.0
    %94 = vmatprep.subr.mxu0 0.0
    %95 = vmatpush1.msra.mxu0 0.0
    %96 = vmatprep.subr.mxu0 0.0
    %97 = vmatpush1.msra.mxu0 0.0
    %98 = vmatprep.subr.mxu0 0.0
    %99 = vmatpush1.msra.mxu0 0.0
    %100 = vmatprep.subr.mxu0 0.0
    %101 = vmatpush1.msra.mxu0 0.0
    %102 = vmatprep.subr.mxu0 0.0
    %103 = vmatpush1.msra.mxu0 0.0
    %104 = vmatprep.subr.mxu0 0.0
    %105 = vmatpush1.msra.mxu0 0.0
    %106 = vmatprep.subr.mxu0 0.0
    %107 = vmatpush1.msra.mxu0 0.0
    %108 = vmatprep.subr.mxu0 0.0
    %109 = vmatpush1.msra.mxu0 0.0
    %110 = vmatprep.subr.mxu0 0.0
    %111 = vmatpush1.msra.mxu0 0.0
    %112 = vmatprep.subr.mxu0 0.0
    %113 = vmatpush1.msra.mxu0 0.0
    %114 = vmatprep.subr.mxu0 0.0
    %115 = vmatpush1.msra.mxu0 0.0
    %116 = vmatprep.subr.mxu0 0.0
    %117 = vmatpush1.msra.mxu0 0.0
    %118 = vmatprep.subr.mxu0 0.0
    %119 = vmatpush1.msra.mxu0 0.0
    %120 = vmatprep.mubr.f32.mxu0 0.0
    %121 = vmatmul.mubr.f32.gmra.mrb[0].mxu0 %v51
    %v122 = vpop.f32.mrb[0].mxu0
    %v123 = vadd.f32 0.0, %v122
    %v124 = vpop.f32.mrb[0].mxu0
    %125 = vmatprep.mubr.f32.mxu0 0.0
    %126 = vmatmul.mubr.f32.gmra.mrb[0].mxu0 %v54
    %v127 = vpop.f32.mrb[0].mxu0
    %v128 = vadd.f32 0.0, %v127
    %v129 = vpop.f32.mrb[0].mxu0
    %130 = vdwg.mxu0
    %v131 = vadd.f32 %v43, %v123
    %v132 = vadd.f32 %v44, %v128
    %v133 = vld [vmem:[%s2] sm:$0x1]
    %v134 = vlaneseq
    %v135 = vshrl.u32 %v134, 7
    %v136 = vsub.s32 0, %v135
    %v137 = vrot.slane %v133, %v136
    %v138 = vadd.f32 %v131, %v137
    %v139 = vadd.f32 %v132, %v137
    %v140 = vld [vmem:[%s2 + $0x1] sm:$0x1]
    %v141 = vld [vmem:[%s2 + $0x2] sm:$0x1]
    %v142 = vsel %vm49, %v138, 0.0
    %143 = vadd.xlane.f32.xlu0 %v142
    %v144 = vpop.xlane.xlu0 %143
    %v145 = vsel %vm49, %v139, 0.0
    %146 = vadd.xlane.f32.xlu0 %v145
    %v147 = vpop.xlane.xlu0 %146
    %v148 = vrcp.pop 32.0
    %v149 = vmul.f32 %v144, %v148
    %v150 = vmul.f32 %v147, %v148
    %v151 = vmul.f32 %v138, %v138
    %v152 = vmul.f32 %v139, %v139
    %v153 = vsel %vm49, %v151, 0.0
    %154 = vadd.xlane.f32.xlu0 %v153
    %v155 = vpop.xlane.xlu0 %154
    %v156 = vsel %vm49, %v152, 0.0
    %157 = vadd.xlane.f32.xlu0 %v156
    %v158 = vpop.xlane.xlu0 %157
    %v159 = vmul.f32 %v155, %v148
    %v160 = vmul.f32 %v158, %v148
    %v161 = vmul.f32 %v149, %v149
    %v162 = vmul.f32 %v150, %v150
    %v163 = vsub.f32 %v159, %v161
    %v164 = vsub.f32 %v160, %v162
    %v165 = vmax.f32 %v163, 0.0
    %v166 = vmax.f32 %v164, 0.0
    %v167 = vadd.f32 %v165, 1e-05
    %v168 = vadd.f32 %v166, 1e-05
    %v169 = vrsqrt.pop %v167
    %v170 = vrsqrt.pop %v168
    %v171 = vsub.f32 %v138, %v149
    %v172 = vsub.f32 %v139, %v150
    %v173 = vlaneseq
    %v174 = vshrl.u32 %v173, 7
    %v175 = vsub.s32 0, %v174
    %v176 = vrot.slane %v140, %v175
    %v177 = vmul.f32 %v169, %v176
    %v178 = vmul.f32 %v170, %v176
    %v179 = vmul.f32 %v171, %v177
    %v180 = vmul.f32 %v172, %v178
    %v181 = vlaneseq
    %v182 = vshrl.u32 %v181, 7
    %v183 = vsub.s32 0, %v182
    %v184 = vrot.slane %v141, %v183
    %v185 = vadd.f32 %v179, %v184
    %v186 = vadd.f32 %v180, %v184
    %187 = vst.msk [vmem:[#allocation7] sm:$0xff] %vm49, %v185
    %188 = vst.msk [vmem:[#allocation7 + $0x8] sm:$0xff] %vm49, %v186
    // Predicated region
    $region22: #{_forward2d.1} parent=1 // pred_check
      _
    $region23: #{_forward2d.1} parent=1 // pred_check_branch
      %190 = sbr.rel (0) target = $region25
    $region24: #{_forward2d.1} parent=1 // pred_region
      %s192 = ssub.s32 256, 256
      %193 = vsyncadd [#allocation4], %s192
      %s194 = sshll.u32 [#allocation7], 4
      %s195 = int_to_ptr.vmem [resolvable:$true] %s194
      %200 = dma.vmem_to_hbm [thread:$0]  %s195, 256, %s3, [#allocation4], 128, 128, 8
    $region25: #{_forward2d.1} parent=1 // pred_fallthru
      _
    // Predicated region
    $region26: #{_forward2d.1} parent=1 // pred_check
      _
    $region27: #{_forward2d.1} parent=1 // pred_check_branch
      %202 = sbr.rel (0) target = $region29
    $region28: #{_forward2d.1} parent=1 // pred_region
      %203 = dma.done [#allocation4], 256
    $region29: #{_forward2d.1} parent=1 // pred_fallthru
      _
    %204 = vsyncpa [#allocation3], 1
    %205 = vsyncpa [#allocation6], 1
    %206 = vsyncpa [#allocation4], 1

</llo_original>
